<compile_context>
chip_gen: v5e
topology: v5e:2x2
jax: 0.10.0
libtpu: 0.0.40
codegen_flags: <defaults>
</compile_context>

<pallas_src>
import math

import jax
import jax.numpy as jnp
import numpy as np
from jax.experimental import pallas as pl
from jax.experimental.pallas import tpu as pltpu


def _round_up(x: int, m: int) -> int:
    return ((x + m - 1) // m) * m


def _gelu_exact(x):
    """Exact (erf-based) GELU; erf via Abramowitz–Stegun 7.1.26 (f32, exp-only)."""
    z = x * 0.7071067811865476                      # x / sqrt(2)
    az = jnp.abs(z)
    t = 1.0 / (1.0 + 0.3275911 * az)
    poly = t * (0.254829592 + t * (-0.284496736 + t * (1.421413741
               + t * (-1.453152027 + t * 1.061405429))))
    erf_abs = 1.0 - poly * jnp.exp(-az * az)
    erf = jnp.where(z >= 0.0, erf_abs, -erf_abs)
    return 0.5 * x * (1.0 + erf)


def make_ffn_kernel(eps: float, compute_dtype):
    def kernel(x_ref, w1_ref, w2_ref, g_ref, b_ref, o_ref):
        x = x_ref[...].astype(jnp.float32)                       # (TM, d) f32

        # lin1 + GELU (MXU matmul, f32 accumulation; GELU stays in f32).
        a = jnp.dot(x.astype(compute_dtype), w1_ref[...],
                    preferred_element_type=jnp.float32)          # (TM, h)
        a = _gelu_exact(a)

        # lin2 + residual.
        y = jnp.dot(a.astype(compute_dtype), w2_ref[...],
                    preferred_element_type=jnp.float32)          # (TM, d)
        y = x + y

        # LayerNorm over feature axis (biased variance, eps inside rsqrt).
        mean = jnp.mean(y, axis=-1, keepdims=True)
        ctr = y - mean
        var = jnp.mean(ctr * ctr, axis=-1, keepdims=True)
        yn = ctr * jax.lax.rsqrt(var + eps)
        o_ref[...] = (yn * g_ref[...] + b_ref[...]).astype(o_ref.dtype)

    return kernel


def feedforward_pallas(x, w1, w2, gamma, beta, *,
                       compute_dtype=jnp.float32, row_tile=256, eps=1e-5):
    """Fused FFN block.

    x:     (..., d) float32 activations.
    w1:    (d, h)  — lin1 weight, already (in, out) layout (torch weight.T).
    w2:    (h, d)  — lin2 weight, already (in, out) layout (torch weight.T).
    gamma: (d,)    — LayerNorm weight.
    beta:  (d,)    — LayerNorm bias.
    """
    orig_shape = x.shape
    d = orig_shape[-1]
    h = w1.shape[1]
    assert w1.shape == (d, h) and w2.shape == (h, d)

    # Flatten all leading dims into one row axis and tile it.
    x2 = x.reshape(-1, d)
    m = x2.shape[0]
    tm = _round_up(min(row_tile, _round_up(m, 8)), 8)
    m_pad = _round_up(m, tm)
    if m_pad != m:
        x2 = jnp.pad(x2, ((0, m_pad - m), (0, 0)))

    # Weights in matmul dtype (halves weight DMA bytes when bf16); LN params f32.
    w1c = w1.astype(compute_dtype)
    w2c = w2.astype(compute_dtype)
    g2 = gamma.reshape(1, d).astype(jnp.float32)
    b2 = beta.reshape(1, d).astype(jnp.float32)

    kernel = make_ffn_kernel(eps=eps, compute_dtype=compute_dtype)

    out = pl.pallas_call(
        kernel,
        out_shape=jax.ShapeDtypeStruct((m_pad, d), x.dtype),
        grid_spec=pltpu.PrefetchScalarGridSpec(
            num_scalar_prefetch=0,
            grid=(m_pad // tm,),
            in_specs=[
                pl.BlockSpec((tm, d), lambda i: (i, 0)),   # X rows (per tile)
                pl.BlockSpec((d, h), lambda i: (0, 0)),    # W1 (VMEM-resident)
                pl.BlockSpec((h, d), lambda i: (0, 0)),    # W2 (VMEM-resident)
                pl.BlockSpec((1, d), lambda i: (0, 0)),    # LN gamma
                pl.BlockSpec((1, d), lambda i: (0, 0)),    # LN beta
            ],
            out_specs=pl.BlockSpec((tm, d), lambda i: (i, 0)),
        ),
        compiler_params=pltpu.CompilerParams(
            dimension_semantics=("parallel",)),
    )(x2, w1c, w2c, g2, b2)

    if m_pad != m:
        out = out[:m]
    return out.reshape(orig_shape)


def feedforward_ref(x, w1, w2, gamma, beta, eps=1e-5):
    """Pure-JAX reference mirroring the PyTorch forward (dropout p=0)."""
    a = jax.nn.gelu(x @ w1, approximate=False)     # exact erf GELU (torch default)
    y = x + a @ w2
    mean = jnp.mean(y, axis=-1, keepdims=True)
    var = jnp.mean((y - mean) ** 2, axis=-1, keepdims=True)
    return (y - mean) * jax.lax.rsqrt(var + eps) * gamma + beta


if __name__ == "__main__":
    # Small shapes consistent with the module (arity == 1, dropout p == 0).
    batch, seq = 2, 8
    input_width, hidden_width = 32, 64

    key = jax.random.PRNGKey(0)
    kx, k1, k2 = jax.random.split(key, 3)

    x = jax.random.normal(kx, (batch, seq, input_width), dtype=jnp.float32)

    # Deterministic parameter init. Stored as (in, out), i.e. transpose of
    # torch's (out, in) Linear layout.
    # Note: the reference module zero-initializes lin2.weight; we use small
    # random values instead so the second matmul is actually exercised.
    def lin_init(k, fan_in, fan_out):
        bound = 1.0 / math.sqrt(fan_in)
        return jax.random.uniform(k, (fan_in, fan_out), jnp.float32, -bound, bound)

    w1 = lin_init(k1, input_width, hidden_width)
    w2 = lin_init(k2, hidden_width, input_width)
    gamma = jnp.ones((input_width,), jnp.float32)
    beta = jnp.zeros((input_width,), jnp.float32)

    ref = feedforward_ref(x, w1, w2, gamma, beta)

    # f32 matmul path (tight tolerance).
    out = feedforward_pallas(x, w1, w2, gamma, beta)
    out = jax.block_until_ready(out)
    np.testing.assert_allclose(np.asarray(out), np.asarray(ref),
                               rtol=1e-4, atol=1e-4)

    # bf16 matmul operands (v6e/v7x-oriented), f32 accumulation + f32 GELU/LN.
    out_bf16 = feedforward_pallas(x, w1, w2, gamma, beta,
                                  compute_dtype=jnp.bfloat16)
    out_bf16 = jax.block_until_ready(out_bf16)
    np.testing.assert_allclose(np.asarray(out_bf16), np.asarray(ref),
                               rtol=5e-2, atol=5e-2)

    print("KERNEL_OK")
</pallas_src>

<mosaic_0001>
module attributes {stable_mosaic.version = 11 : i64} {
  func.func @kernel(%arg0: i32, %arg1: memref<16x32xf32, #tpu.memory_space<vmem>>, %arg2: memref<32x64xf32, #tpu.memory_space<vmem>>, %arg3: memref<64x32xf32, #tpu.memory_space<vmem>>, %arg4: memref<1x32xf32, #tpu.memory_space<vmem>>, %arg5: memref<1x32xf32, #tpu.memory_space<vmem>>, %arg6: memref<16x32xf32, #tpu.memory_space<vmem>>) attributes {dimension_semantics = [#tpu.dimension_semantics<parallel>], iteration_bounds = array<i64: 1>, scalar_prefetch = 0 : i64, scratch_operands = 0 : i64, tpu.core_type = #tpu.core_type<tc>, window_params = [{transform_indices = @transform_0, window_bounds = array<i64: 16, 32>}, {pipeline_mode = #tpu.pipeline_mode<synchronous>, transform_indices = @transform_1, window_bounds = array<i64: 32, 64>}, {pipeline_mode = #tpu.pipeline_mode<synchronous>, transform_indices = @transform_2, window_bounds = array<i64: 64, 32>}, {pipeline_mode = #tpu.pipeline_mode<synchronous>, transform_indices = @transform_3, window_bounds = array<i64: 1, 32>}, {pipeline_mode = #tpu.pipeline_mode<synchronous>, transform_indices = @transform_4, window_bounds = array<i64: 1, 32>}, {transform_indices = @transform_5, window_bounds = array<i64: 16, 32>}]} {
    %c0 = arith.constant 0 : index
    %c0_0 = arith.constant 0 : index
    %0 = vector.load %arg1[%c0, %c0_0] : memref<16x32xf32, #tpu.memory_space<vmem>>, vector<16x32xf32>
    %c0_1 = arith.constant 0 : index
    %c0_2 = arith.constant 0 : index
    %1 = vector.load %arg2[%c0_1, %c0_2] : memref<32x64xf32, #tpu.memory_space<vmem>>, vector<32x64xf32>
    %cst = arith.constant dense<0.000000e+00> : vector<16x64xf32>
    %2 = tpu.matmul %0, %1, %cst {dimension_numbers = #tpu.dot_dimension_numbers<[1], [0], [0], [1], [0, 0, 1, 1], [], []>} : vector<16x32xf32>, vector<32x64xf32>, vector<16x64xf32> -> vector<16x64xf32>
    %cst_3 = arith.constant 0.707106769 : f32
    %3 = vector.broadcast %cst_3 : f32 to vector<16x64xf32>
    %4 = arith.mulf %2, %3 : vector<16x64xf32>
    %5 = math.absf %4 : vector<16x64xf32>
    %cst_4 = arith.constant 0.327591091 : f32
    %6 = vector.broadcast %cst_4 : f32 to vector<16x64xf32>
    %7 = arith.mulf %6, %5 : vector<16x64xf32>
    %cst_5 = arith.constant 1.000000e+00 : f32
    %8 = vector.broadcast %cst_5 : f32 to vector<16x64xf32>
    %9 = arith.addf %8, %7 : vector<16x64xf32>
    %cst_6 = arith.constant 1.000000e+00 : f32
    %10 = vector.broadcast %cst_6 : f32 to vector<16x64xf32>
    %11 = arith.divf %10, %9 : vector<16x64xf32>
    %cst_7 = arith.constant 1.06140542 : f32
    %12 = vector.broadcast %cst_7 : f32 to vector<16x64xf32>
    %13 = arith.mulf %11, %12 : vector<16x64xf32>
    %cst_8 = arith.constant -1.45315206 : f32
    %14 = vector.broadcast %cst_8 : f32 to vector<16x64xf32>
    %15 = arith.addf %14, %13 : vector<16x64xf32>
    %16 = arith.mulf %11, %15 : vector<16x64xf32>
    %cst_9 = arith.constant 1.42141378 : f32
    %17 = vector.broadcast %cst_9 : f32 to vector<16x64xf32>
    %18 = arith.addf %17, %16 : vector<16x64xf32>
    %19 = arith.mulf %11, %18 : vector<16x64xf32>
    %cst_10 = arith.constant -0.284496725 : f32
    %20 = vector.broadcast %cst_10 : f32 to vector<16x64xf32>
    %21 = arith.addf %20, %19 : vector<16x64xf32>
    %22 = arith.mulf %11, %21 : vector<16x64xf32>
    %cst_11 = arith.constant 0.254829586 : f32
    %23 = vector.broadcast %cst_11 : f32 to vector<16x64xf32>
    %24 = arith.addf %23, %22 : vector<16x64xf32>
    %25 = arith.mulf %11, %24 : vector<16x64xf32>
    %cst_12 = arith.constant 0.000000e+00 : f32
    %26 = vector.broadcast %cst_12 : f32 to vector<16x64xf32>
    %27 = arith.subf %26, %5 : vector<16x64xf32>
    %28 = arith.mulf %27, %5 : vector<16x64xf32>
    %29 = math.exp %28 : vector<16x64xf32>
    %30 = arith.mulf %25, %29 : vector<16x64xf32>
    %cst_13 = arith.constant 1.000000e+00 : f32
    %31 = vector.broadcast %cst_13 : f32 to vector<16x64xf32>
    %32 = arith.subf %31, %30 : vector<16x64xf32>
    %cst_14 = arith.constant 0.000000e+00 : f32
    %33 = vector.broadcast %cst_14 : f32 to vector<16x64xf32>
    %34 = arith.cmpf oge, %4, %33 : vector<16x64xf32>
    %cst_15 = arith.constant 0.000000e+00 : f32
    %35 = vector.broadcast %cst_15 : f32 to vector<16x64xf32>
    %36 = arith.subf %35, %32 : vector<16x64xf32>
    %37 = arith.select %34, %32, %36 : vector<16x64xi1>, vector<16x64xf32>
    %cst_16 = arith.constant 5.000000e-01 : f32
    %38 = vector.broadcast %cst_16 : f32 to vector<16x64xf32>
    %39 = arith.mulf %38, %2 : vector<16x64xf32>
    %cst_17 = arith.constant 1.000000e+00 : f32
    %40 = vector.broadcast %cst_17 : f32 to vector<16x64xf32>
    %41 = arith.addf %40, %37 : vector<16x64xf32>
    %42 = arith.mulf %39, %41 : vector<16x64xf32>
    %c0_18 = arith.constant 0 : index
    %c0_19 = arith.constant 0 : index
    %43 = vector.load %arg3[%c0_18, %c0_19] : memref<64x32xf32, #tpu.memory_space<vmem>>, vector<64x32xf32>
    %cst_20 = arith.constant dense<0.000000e+00> : vector<16x32xf32>
    %44 = tpu.matmul %42, %43, %cst_20 {dimension_numbers = #tpu.dot_dimension_numbers<[1], [0], [0], [1], [0, 0, 1, 1], [], []>} : vector<16x64xf32>, vector<64x32xf32>, vector<16x32xf32> -> vector<16x32xf32>
    %45 = arith.addf %0, %44 : vector<16x32xf32>
    %cst_21 = arith.constant dense<0.000000e+00> : vector<16xf32>
    %46 = vector.multi_reduction <add>, %45, %cst_21 [1] : vector<16x32xf32> to vector<16xf32>
    %47 = vector.shape_cast %46 : vector<16xf32> to vector<16x1xf32>
    %cst_22 = arith.constant 3.200000e+01 : f32
    %48 = vector.broadcast %cst_22 : f32 to vector<16x1xf32>
    %49 = arith.divf %47, %48 : vector<16x1xf32>
    %50 = vector.broadcast %49 : vector<16x1xf32> to vector<16x32xf32>
    %51 = arith.subf %45, %50 : vector<16x32xf32>
    %52 = arith.mulf %51, %51 : vector<16x32xf32>
    %cst_23 = arith.constant dense<0.000000e+00> : vector<16xf32>
    %53 = vector.multi_reduction <add>, %52, %cst_23 [1] : vector<16x32xf32> to vector<16xf32>
    %54 = vector.shape_cast %53 : vector<16xf32> to vector<16x1xf32>
    %cst_24 = arith.constant 3.200000e+01 : f32
    %55 = vector.broadcast %cst_24 : f32 to vector<16x1xf32>
    %56 = arith.divf %54, %55 : vector<16x1xf32>
    %cst_25 = arith.constant 9.99999974E-6 : f32
    %57 = vector.broadcast %cst_25 : f32 to vector<16x1xf32>
    %58 = arith.addf %56, %57 : vector<16x1xf32>
    %59 = math.rsqrt %58 : vector<16x1xf32>
    %60 = vector.broadcast %59 : vector<16x1xf32> to vector<16x32xf32>
    %61 = arith.mulf %51, %60 : vector<16x32xf32>
    %c0_26 = arith.constant 0 : index
    %c0_27 = arith.constant 0 : index
    %62 = vector.load %arg4[%c0_26, %c0_27] : memref<1x32xf32, #tpu.memory_space<vmem>>, vector<1x32xf32>
    %63 = vector.broadcast %62 : vector<1x32xf32> to vector<16x32xf32>
    %64 = arith.mulf %61, %63 : vector<16x32xf32>
    %c0_28 = arith.constant 0 : index
    %c0_29 = arith.constant 0 : index
    %65 = vector.load %arg5[%c0_28, %c0_29] : memref<1x32xf32, #tpu.memory_space<vmem>>, vector<1x32xf32>
    %66 = vector.broadcast %65 : vector<1x32xf32> to vector<16x32xf32>
    %67 = arith.addf %64, %66 : vector<16x32xf32>
    %c0_30 = arith.constant 0 : index
    %c0_31 = arith.constant 0 : index
    %68 = vector.load %arg6[%c0_30, %c0_31] : memref<16x32xf32, #tpu.memory_space<vmem>>, vector<16x32xf32>
    tpu.vector_store %arg6[%c0_30, %c0_31], %67 {strides = array<i32>} : memref<16x32xf32, #tpu.memory_space<vmem>>, vector<16x32xf32>,
    return
  }
  func.func @transform_0(%arg0: i32) -> (i32, i32) {
    %c0_i32 = arith.constant 0 : i32
    %c0_i32_0 = arith.constant 0 : i32
    return %arg0, %c0_i32 : i32, i32
  }
  func.func @transform_1(%arg0: i32) -> (i32, i32) {
    %c0_i32 = arith.constant 0 : i32
    %c0_i32_0 = arith.constant 0 : i32
    %c0_i32_1 = arith.constant 0 : i32
    return %c0_i32, %c0_i32_0 : i32, i32
  }
  func.func @transform_2(%arg0: i32) -> (i32, i32) {
    %c0_i32 = arith.constant 0 : i32
    %c0_i32_0 = arith.constant 0 : i32
    %c0_i32_1 = arith.constant 0 : i32
    return %c0_i32, %c0_i32_0 : i32, i32
  }
  func.func @transform_3(%arg0: i32) -> (i32, i32) {
    %c0_i32 = arith.constant 0 : i32
    %c0_i32_0 = arith.constant 0 : i32
    %c0_i32_1 = arith.constant 0 : i32
    return %c0_i32, %c0_i32_0 : i32, i32
  }
  func.func @transform_4(%arg0: i32) -> (i32, i32) {
    %c0_i32 = arith.constant 0 : i32
    %c0_i32_0 = arith.constant 0 : i32
    %c0_i32_1 = arith.constant 0 : i32
    return %c0_i32, %c0_i32_0 : i32, i32
  }
  func.func @transform_5(%arg0: i32) -> (i32, i32) {
    %c0_i32 = arith.constant 0 : i32
    %c0_i32_0 = arith.constant 0 : i32
    return %arg0, %c0_i32 : i32, i32
  }
}

</mosaic_0001>

<llo_original>
// kernel: tpu_custom_call.1
$region0: #{tpu_custom_call.1}
  #allocation0 [shape = 'u32[]', space=smem, size = 0x4, offset = 0x4, fixed_abs, tag = 'smem constant byte address 0x4 - core index']
  #allocation1 [shape = 'u32[72,128]{1,0:T(1,128)}', space=vmem, size = 0x9000, scoped, tag = 'internal scratch']
  %s0 = inlined_call_operand.vmem [shape: f32[16,32], index: 0, kind: input, shape index: {}]
  %s1 = inlined_call_operand.vmem [shape: f32[32,64], index: 1, kind: input, shape index: {}]
  %s2 = inlined_call_operand.vmem [shape: f32[64,32], index: 2, kind: input, shape index: {}]
  %s3 = inlined_call_operand.vmem [shape: f32[1,32], index: 3, kind: input, shape index: {}]
  %s4 = inlined_call_operand.vmem [shape: f32[1,32], index: 4, kind: input, shape index: {}]
  %s5 = inlined_call_operand.hbm [shape: f32[16,32], index: 5, kind: output, shape index: {}]
  %s6 = sld [smem:[#allocation0]]
  $region30: #{tpu_custom_call.1} parent=0
    _
  %s8 = ssub.s32 1, %s6
  %s9 = scalar_select 0, %s8, %s6
  $region1: #{tpu_custom_call.1} parent=0
    #allocation2 [shape = 'u8[8192]{0}', space=vmem, size = 0x2000, scoped, tag = 'output window, operand 0, single buffered']
    #allocation3 [shape = 's32[1]{0}', space=sflag, size = 0x4, scoped, tag = 'scoped memory for tpu_custom_call.1']
    %10 = vsyncpa [#allocation3], 0
    // Predicated region
    $region2: #{tpu_custom_call.1} parent=1 // pred_check
      _
    $region3: #{tpu_custom_call.1} parent=1 // pred_check_branch
      %12 = sbr.rel (0) target = $region5
    $region4: #{tpu_custom_call.1} parent=1 // pred_region
      _
    $region5: #{tpu_custom_call.1} parent=1 // pred_fallthru
      _
    // Predicated region
    $region6: #{tpu_custom_call.1} parent=1 // pred_check
      _
    $region7: #{tpu_custom_call.1} parent=1 // pred_check_branch
      %14 = sbr.rel (0) target = $region9
    $region8: #{tpu_custom_call.1} parent=1 // pred_region
      _
    $region9: #{tpu_custom_call.1} parent=1 // pred_fallthru
      _
    // Predicated region
    $region10: #{tpu_custom_call.1} parent=1 // pred_check
      _
    $region11: #{tpu_custom_call.1} parent=1 // pred_check_branch
      %16 = sbr.rel (0) target = $region13
    $region12: #{tpu_custom_call.1} parent=1 // pred_region
      _
    $region13: #{tpu_custom_call.1} parent=1 // pred_fallthru
      _
    // Predicated region
    $region14: #{tpu_custom_call.1} parent=1 // pred_check
      _
    $region15: #{tpu_custom_call.1} parent=1 // pred_check_branch
      %18 = sbr.rel (0) target = $region17
    $region16: #{tpu_custom_call.1} parent=1 // pred_region
      _
    $region17: #{tpu_custom_call.1} parent=1 // pred_fallthru
      _
    // Predicated region
    $region18: #{tpu_custom_call.1} parent=1 // pred_check
      _
    $region19: #{tpu_custom_call.1} parent=1 // pred_check_branch
      %20 = sbr.rel (0) target = $region21
    $region20: #{tpu_custom_call.1} parent=1 // pred_region
      _
    $region21: #{tpu_custom_call.1} parent=1 // pred_fallthru
      _
    %v21 = vld [vmem:[%s0] sm:$0xff]
    %v22 = vld [vmem:[%s0 + $0x8] sm:$0xff]
    %v23 = vld [vmem:[%s1] sm:$0xff]
    %v24 = vld [vmem:[%s1 + $0x8] sm:$0xff]
    %v25 = vld [vmem:[%s1 + $0x10] sm:$0xff]
    %v26 = vld [vmem:[%s1 + $0x18] sm:$0xff]
    %vm27 = vcmask 261120
    %v29 = vsel %vm27, %v21, 0
    %v32 = vsel %vm27, %v22, 0
    %34 = vmatpush.msra.mxu0 0.0
    %35 = vmatpush.msra.mxu0 0.0
    %36 = vmatpush.msra.mxu0 0.0
    %37 = vmatpush.msra.mxu0 0.0
    %38 = vmatpush.msra.mxu0 0.0
    %39 = vmatpush.msra.mxu0 0.0
    %40 = vmatpush.msra.mxu0 0.0
    %41 = vmatpush.msra.mxu0 0.0
    %42 = vmatpush.msra.mxu0 0.0
    %43 = vmatpush.msra.mxu0 0.0
    %44 = vmatpush.msra.mxu0 0.0
    %45 = vmatpush.msra.mxu0 0.0
    %46 = vmatpush.msra.mxu0 %v26
    %47 = vmatpush.msra.mxu0 %v25
    %48 = vmatpush.msra.mxu0 %v24
    %49 = vmatpush.msra.mxu0 %v23
    %50 = vmatmul.f32.gmra.mxu0 %v29
    %v51 = vpop.f32.mrf.mxu0
    %v52 = vadd.f32 0.0, %v51
    %53 = vmatmul.f32.gmra.mxu0 %v32
    %v54 = vpop.f32.mrf.mxu0
    %v55 = vadd.f32 0.0, %v54
    %56 = vdwg.mxu0
    %v57 = vmul.f32 %v52, 0.70710677
    %v58 = vmul.f32 %v55, 0.70710677
    %v59 = vand.u32 2147483647, %v57
    %v60 = vand.u32 2147483647, %v58
    %v61 = vmul.f32 %v59, 0.3275911
    %v62 = vmul.f32 %v60, 0.3275911
    %v63 = vadd.f32 %v61, 1.0
    %v64 = vadd.f32 %v62, 1.0
    %v65 = vrcp.pop %v63
    %v66 = vmul.f32 %v63, %v65
    %v67 = vsub.f32 1.0, %v66
    %v68 = vmul.f32 %v65, %v67
    %v69 = vadd.f32 %v65, %v68
    %vm70 = vweird.f32 %v63
    %vm71 = vweird.f32 %v65
    %vm72 = vmor %vm70, %vm71
    %v73 = vsel %vm72, %v65, %v69
    %v74 = vand.u32 2147483647, %v63
    %vm75 = vcmp.eq.f32.partialorder %v74, 8.507059e+37
    %v76 = vand.u32 %v63, 2147483648
    %v77 = vor.u32 1.1754944e-38, %v76
    %v78 = vsel %vm75, %v77, %v73
    %v79 = vmul.f32 1.0, %v78
    %v80 = vrcp.pop %v64
    %v81 = vmul.f32 %v64, %v80
    %v82 = vsub.f32 1.0, %v81
    %v83 = vmul.f32 %v80, %v82
    %v84 = vadd.f32 %v80, %v83
    %vm85 = vweird.f32 %v64
    %vm86 = vweird.f32 %v80
    %vm87 = vmor %vm85, %vm86
    %v88 = vsel %vm87, %v80, %v84
    %v89 = vand.u32 2147483647, %v64
    %vm90 = vcmp.eq.f32.partialorder %v89, 8.507059e+37
    %v91 = vand.u32 %v64, 2147483648
    %v92 = vor.u32 1.1754944e-38, %v91
    %v93 = vsel %vm90, %v92, %v88
    %v94 = vmul.f32 1.0, %v93
    %v95 = vmul.f32 %v79, 1.0614054
    %v96 = vmul.f32 %v94, 1.0614054
    %v97 = vadd.f32 %v95, -1.4531521
    %v98 = vadd.f32 %v96, -1.4531521
    %v99 = vmul.f32 %v79, %v97
    %v100 = vmul.f32 %v94, %v98
    %v101 = vadd.f32 %v99, 1.4214138
    %v102 = vadd.f32 %v100, 1.4214138
    %v103 = vmul.f32 %v79, %v101
    %v104 = vmul.f32 %v94, %v102
    %v105 = vadd.f32 %v103, -0.28449672
    %v106 = vadd.f32 %v104, -0.28449672
    %v107 = vmul.f32 %v79, %v105
    %v108 = vmul.f32 %v94, %v106
    %v109 = vadd.f32 %v107, 0.2548296
    %v110 = vadd.f32 %v108, 0.2548296
    %v111 = vmul.f32 %v79, %v109
    %v112 = vmul.f32 %v94, %v110
    %v113 = vsub.f32 0.0, %v59
    %v114 = vsub.f32 0.0, %v60
    %v115 = vmul.f32 %v113, %v59
    %v116 = vmul.f32 %v114, %v60
    %v117 = vmul.f32 %v115, 1.442695
    %v118 = vpow.pop %v117
    %v119 = vmul.f32 %v116, 1.442695
    %v120 = vpow.pop %v119
    %v121 = vmul.f32 %v111, %v118
    %v122 = vmul.f32 %v112, %v120
    %v123 = vsub.f32 1.0, %v121
    %v124 = vsub.f32 1.0, %v122
    %vm125 = vcmp.ge.f32.partialorder %v57, 0.0
    %vm126 = vcmp.ge.f32.partialorder %v58, 0.0
    %v127 = vsub.f32 0.0, %v123
    %v128 = vsub.f32 0.0, %v124
    %v129 = vsel %vm125, %v123, %v127
    %v130 = vsel %vm126, %v124, %v128
    %v131 = vmul.f32 %v52, 0.5
    %v132 = vmul.f32 %v55, 0.5
    %v133 = vadd.f32 %v129, 1.0
    %v134 = vadd.f32 %v130, 1.0
    %v135 = vmul.f32 %v131, %v133
    %v136 = vmul.f32 %v132, %v134
    %v137 = vld [vmem:[%s2] sm:$0xff]
    %v138 = vld [vmem:[%s2 + $0x8] sm:$0xff]
    %v139 = vld [vmem:[%s2 + $0x10] sm:$0xff]
    %v140 = vld [vmem:[%s2 + $0x18] sm:$0xff]
    %v141 = vld [vmem:[%s2 + $0x20] sm:$0xff]
    %v142 = vld [vmem:[%s2 + $0x28] sm:$0xff]
    %v143 = vld [vmem:[%s2 + $0x30] sm:$0xff]
    %v144 = vld [vmem:[%s2 + $0x38] sm:$0xff]
    %vm145 = vcmask 523264
    %v147 = vsel %vm145, %v135, 0
    %v150 = vsel %vm145, %v136, 0
    %152 = vmatpush.msra.mxu0 0.0
    %153 = vmatpush.msra.mxu0 0.0
    %154 = vmatpush.msra.mxu0 0.0
    %155 = vmatpush.msra.mxu0 0.0
    %156 = vmatpush.msra.mxu0 0.0
    %157 = vmatpush.msra.mxu0 0.0
    %158 = vmatpush.msra.mxu0 0.0
    %159 = vmatpush.msra.mxu0 0.0
    %160 = vmatpush.msra.mxu0 %v144
    %161 = vmatpush.msra.mxu0 %v143
    %162 = vmatpush.msra.mxu0 %v142
    %163 = vmatpush.msra.mxu0 %v141
    %164 = vmatpush.msra.mxu0 %v140
    %165 = vmatpush.msra.mxu0 %v139
    %166 = vmatpush.msra.mxu0 %v138
    %167 = vmatpush.msra.mxu0 %v137
    %168 = vmatmul.f32.gmra.mxu0 %v147
    %v169 = vpop.f32.mrf.mxu0
    %v170 = vadd.f32 0.0, %v169
    %171 = vmatmul.f32.gmra.mxu0 %v150
    %v172 = vpop.f32.mrf.mxu0
    %v173 = vadd.f32 0.0, %v172
    %174 = vdwg.mxu0
    %v175 = vadd.f32 %v21, %v170
    %v176 = vadd.f32 %v22, %v173
    %v177 = vsel %vm27, %v175, 0.0
    %178 = vadd.xlane.f32.xlu0 %v177
    %v179 = vpop.xlane.xlu0 %178
    %v180 = vsel %vm27, %v176, 0.0
    %181 = vadd.xlane.f32.xlu0 %v180
    %v182 = vpop.xlane.xlu0 %181
    %v183 = vrcp.pop 32.0
    %v184 = vmul.f32 32.0, %v183
    %v185 = vsub.f32 1.0, %v184
    %v186 = vmul.f32 %v183, %v185
    %v187 = vadd.f32 %v183, %v186
    %vm188 = vweird.f32 %v183
    %v189 = vsel %vm188, %v183, %v187
    %v190 = vmul.f32 %v179, %v189
    %v191 = vmul.f32 %v182, %v189
    %v192 = vsub.f32 %v175, %v190
    %v193 = vsub.f32 %v176, %v191
    %v194 = vmul.f32 %v192, %v192
    %v195 = vmul.f32 %v193, %v193
    %v196 = vsel %vm27, %v194, 0.0
    %197 = vadd.xlane.f32.xlu0 %v196
    %v198 = vpop.xlane.xlu0 %197
    %v199 = vsel %vm27, %v195, 0.0
    %200 = vadd.xlane.f32.xlu0 %v199
    %v201 = vpop.xlane.xlu0 %200
    %v202 = vmul.f32 %v198, %v189
    %v203 = vmul.f32 %v201, %v189
    %v204 = vadd.f32 %v202, 1e-05
    %v205 = vadd.f32 %v203, 1e-05
    %v206 = vrsqrt.pop %v204
    %v207 = vmul.f32 %v206, %v204
    %v208 = vmul.f32 %v207, %v206
    %v209 = vmul.f32 0.5, %v208
    %v210 = vsub.f32 1.5, %v209
    %v211 = vmul.f32 %v206, %v210
    %vm212 = vweird.f32 %v204
    %vm213 = vweird.f32 %v206
    %vm214 = vmor %vm212, %vm213
    %v215 = vsel %vm214, %v206, %v211
    %v216 = vrsqrt.pop %v205
    %v217 = vmul.f32 %v216, %v205
    %v218 = vmul.f32 %v217, %v216
    %v219 = vmul.f32 0.5, %v218
    %v220 = vsub.f32 1.5, %v219
    %v221 = vmul.f32 %v216, %v220
    %vm222 = vweird.f32 %v205
    %vm223 = vweird.f32 %v216
    %vm224 = vmor %vm222, %vm223
    %v225 = vsel %vm224, %v216, %v221
    %v226 = vmul.f32 %v192, %v215
    %v227 = vmul.f32 %v193, %v225
    %v228 = vld [vmem:[%s3] sm:$0x1]
    %v230 = vperm.slane %v228, 0
    %v232 = vmul.f32 %v226, %v230
    %v233 = vmul.f32 %v227, %v230
    %v234 = vld [vmem:[%s4] sm:$0x1]
    %v236 = vperm.slane %v234, 0
    %v238 = vadd.f32 %v232, %v236
    %v239 = vadd.f32 %v233, %v236
    %240 = vst.msk [vmem:[#allocation2] sm:$0xff] %vm27, %v238
    %241 = vst.msk [vmem:[#allocation2 + $0x8] sm:$0xff] %vm27, %v239
    // Predicated region
    $region22: #{tpu_custom_call.1} parent=1 // pred_check
      _
    $region23: #{tpu_custom_call.1} parent=1 // pred_check_branch
      %243 = sbr.rel (0) target = $region25
    $region24: #{tpu_custom_call.1} parent=1 // pred_region
      %245 = vsyncadd [#allocation3], 0
      %s246 = sshll.u32 [#allocation2], 4
      %s247 = int_to_ptr.vmem [resolvable:$true] %s246
      %s248 = sshll.u32 %s5, 4
      %s249 = int_to_ptr.hbm [resolvable:$true] %s248
      %254 = dma.vmem_to_hbm [thread:$0]  %s247, 256, %s249, [#allocation3], 128, 128, 8
    $region25: #{tpu_custom_call.1} parent=1 // pred_fallthru
      _
    // Predicated region
    $region26: #{tpu_custom_call.1} parent=1 // pred_check
      _
    $region27: #{tpu_custom_call.1} parent=1 // pred_check_branch
      %256 = sbr.rel (0) target = $region29
    $region28: #{tpu_custom_call.1} parent=1 // pred_region
      %258 = dma.done [#allocation3], 256
    $region29: #{tpu_custom_call.1} parent=1 // pred_fallthru
      _
    %259 = vsyncpa [#allocation3], 1

</llo_original>
